<compile_context>
chip_gen: v6e
topology: v6e:2x2x1
jax: 0.10.0
libtpu: 0.0.40
codegen_flags: <defaults>
</compile_context>

<pallas_src>
import numpy as np
import jax
import jax.numpy as jnp
from jax.experimental import pallas as pl
from jax.experimental.pallas import tpu as pltpu

HIGHEST = jax.lax.Precision.HIGHEST
EPS = 1e-5
VMEM_LIMIT = 32 * 1024 * 1024


# ---------------------------------------------------------------------------
# kernel A: bilinear x2 upsample + 2x2 conv (bias) + ConstantPad2d([0,1,0,1])
# ---------------------------------------------------------------------------
def _up_conv2x2(x_nhwc, wm_bf16, b_up, *, H, W, Cin, Cup):
    N = x_nhwc.shape[0]
    HP, WP = 2 * H, 2 * W

    def kernel(x_ref, w_ref, b_ref, o_ref):
        x3 = x_ref[0]                                           # (H, W, Cin) f32

        # ---- bilinear x2 along H (VPU), interleave via leading-dim reshape (free)
        xu = jnp.concatenate([x3[:1], x3[:-1]], axis=0)         # x[i-1], edge-clamped
        xd = jnp.concatenate([x3[1:], x3[-1:]], axis=0)         # x[i+1], edge-clamped
        he = 0.75 * x3 + 0.25 * xu                              # row 2i
        ho = 0.75 * x3 + 0.25 * xd                              # row 2i+1
        uh = jnp.concatenate([he[:, None], ho[:, None]], axis=1).reshape(HP, W, Cin)

        # ---- bilinear x2 along W, kept phase-split (even / odd output columns)
        ul = jnp.concatenate([uh[:, :1], uh[:, :-1]], axis=1)
        ur = jnp.concatenate([uh[:, 1:], uh[:, -1:]], axis=1)
        ue = 0.75 * uh + 0.25 * ul                              # up[:, 2j]
        uo = 0.75 * uh + 0.25 * ur                              # up[:, 2j+1]

        # ---- 2x2 valid conv folded into one matmul per phase (K = 4*Cin, bf16 -> f32)
        ue_n = jnp.concatenate([ue[1:], ue[-1:]], axis=0)       # ue[p+1]
        uo_n = jnp.concatenate([uo[1:], uo[-1:]], axis=0)       # uo[p+1]
        ue_r = jnp.concatenate([ue[:, 1:], ue[:, -1:]], axis=1)     # ue[:, j+1]
        ue_nr = jnp.concatenate([ue_n[:, 1:], ue_n[:, -1:]], axis=1)

        w = w_ref[...]                                          # (4*Cin, Cup) bf16
        pe = jnp.concatenate([ue, uo, ue_n, uo_n], axis=-1).astype(jnp.bfloat16)
        po = jnp.concatenate([uo, ue_r, uo_n, ue_nr], axis=-1).astype(jnp.bfloat16)
        ce = jnp.dot(pe.reshape(HP * W, 4 * Cin), w,
                     preferred_element_type=jnp.float32).reshape(HP, W, Cup)
        co = jnp.dot(po.reshape(HP * W, 4 * Cin), w,
                     preferred_element_type=jnp.float32).reshape(HP, W, Cup)
        ce = ce + b_ref[...]
        co = co + b_ref[...]

        # ---- ConstantPad2d([0,1,0,1], 0): zero last row (both phases) & last column
        rows = jax.lax.broadcasted_iota(jnp.int32, (HP, W, 1), 0)
        cols = jax.lax.broadcasted_iota(jnp.int32, (HP, W, 1), 1)
        ce = jnp.where(rows < HP - 1, ce, 0.0)
        co = jnp.where((rows < HP - 1) & (cols < W - 1), co, 0.0)

        # (HP, W, 2*Cup) == (HP, 2W, Cup) after a free reshape in the wrapper
        o_ref[0] = jnp.concatenate([ce, co], axis=-1).astype(o_ref.dtype)

    return pl.pallas_call(
        kernel,
        out_shape=jax.ShapeDtypeStruct((N, HP, W, 2 * Cup), jnp.float32),
        grid=(N,),
        in_specs=[
            pl.BlockSpec((1, H, W, Cin), lambda n: (n, 0, 0, 0)),
            pl.BlockSpec((4 * Cin, Cup), lambda n: (0, 0)),
            pl.BlockSpec((1, Cup), lambda n: (0, 0)),
        ],
        out_specs=pl.BlockSpec((1, HP, W, 2 * Cup), lambda n: (n, 0, 0, 0)),
        compiler_params=pltpu.CompilerParams(
            dimension_semantics=("parallel",), vmem_limit_bytes=VMEM_LIMIT),
    )(x_nhwc, wm_bf16, b_up)


# ---------------------------------------------------------------------------
# kernel B: 3x3 conv (pad=1, no bias) as one im2col matmul + BN partial stats,
#           optional fused pre-normalisation (previous BN + ReLU) of the input.
# ---------------------------------------------------------------------------
def _conv3x3_stats(inputs, w_bf16, *, HP, WP, prenorm=None):
    N, R, _ = inputs[0].shape
    c_list = [int(t.shape[-1]) for t in inputs]
    C_tot = sum(c_list)
    Cout = int(w_bf16.shape[-1])
    n_in = len(inputs)
    has_pre = prenorm is not None
    M = ((WP + 1 + 7) // 8) * 8            # halo margin rows (>= WP+1, sublane aligned)

    def kernel(*args):
        n_fixed = n_in + (2 if has_pre else 0) + 1
        in_refs = args[:n_fixed]
        o_ref, s_ref, ss_ref, scr = args[n_fixed:]
        x_refs = in_refs[:n_in]
        if has_pre:
            sc_ref, sh_ref = in_refs[n_in], in_refs[n_in + 1]
        w_ref = in_refs[-1]

        # zero halo margins, then place (pre-normalised) inputs side by side in VMEM
        zeros = jnp.zeros((M, C_tot), jnp.bfloat16)
        scr[0:M, :] = zeros
        scr[M + R:M + R + M, :] = zeros
        off = 0
        for k in range(n_in):
            xk = x_refs[k][0]                                   # (R, Ck) f32
            if has_pre and k == 0:
                xk = jnp.maximum(xk * sc_ref[...] + sh_ref[...], 0.0)
            scr[M:M + R, off:off + c_list[k]] = xk.astype(jnp.bfloat16)
            off += c_list[k]

        # column-validity masks applied once while building the patch buffer
        rr = jax.lax.broadcasted_iota(jnp.int32, (R, 1), 0)
        col = rr % WP
        not_first = col != 0
        not_last = col != WP - 1

        pieces = []
        for dy in (-1, 0, 1):
            for dx in (-1, 0, 1):
                o = M + dy * WP + dx
                p = scr[o:o + R, :]
                if dx == -1:
                    p = jnp.where(not_first, p, jnp.zeros_like(p))
                elif dx == 1:
                    p = jnp.where(not_last, p, jnp.zeros_like(p))
                pieces.append(p)
        patch = jnp.concatenate(pieces, axis=-1)                # (R, 9*C_tot) bf16
        acc = jnp.dot(patch, w_ref[...], preferred_element_type=jnp.float32)

        o_ref[0] = acc.astype(o_ref.dtype)
        # per-image partial sums for training-mode BatchNorm (kept in f32)
        s_ref[0] = jnp.sum(acc, axis=0, keepdims=True)
        ss_ref[0] = jnp.sum(acc * acc, axis=0, keepdims=True)

    in_specs = [pl.BlockSpec((1, R, c), lambda n: (n, 0, 0)) for c in c_list]
    call_inputs = list(inputs)
    if has_pre:
        sc, sh = prenorm
        in_specs += [pl.BlockSpec((1, c_list[0]), lambda n: (0, 0)),
                     pl.BlockSpec((1, c_list[0]), lambda n: (0, 0))]
        call_inputs += [sc, sh]
    in_specs.append(pl.BlockSpec((9 * C_tot, Cout), lambda n: (0, 0)))
    call_inputs.append(w_bf16)

    return pl.pallas_call(
        kernel,
        out_shape=(jax.ShapeDtypeStruct((N, R, Cout), jnp.float32),
                   jax.ShapeDtypeStruct((N, 1, Cout), jnp.float32),
                   jax.ShapeDtypeStruct((N, 1, Cout), jnp.float32)),
        grid=(N,),
        in_specs=in_specs,
        out_specs=(pl.BlockSpec((1, R, Cout), lambda n: (n, 0, 0)),
                   pl.BlockSpec((1, 1, Cout), lambda n: (n, 0, 0)),
                   pl.BlockSpec((1, 1, Cout), lambda n: (n, 0, 0))),
        scratch_shapes=[pltpu.VMEM((R + 2 * M, C_tot), jnp.bfloat16)],
        compiler_params=pltpu.CompilerParams(
            dimension_semantics=("parallel",), vmem_limit_bytes=VMEM_LIMIT),
    )(*call_inputs)


# ---------------------------------------------------------------------------
# kernel C: final BatchNorm (precomputed scale/shift) + ReLU
# ---------------------------------------------------------------------------
def _bn_relu(x, scale, shift):
    N, R, C = x.shape

    def kernel(x_ref, sc_ref, sh_ref, o_ref):
        o_ref[0] = jnp.maximum(x_ref[0] * sc_ref[...] + sh_ref[...],
                               0.0).astype(o_ref.dtype)

    return pl.pallas_call(
        kernel,
        out_shape=jax.ShapeDtypeStruct((N, R, C), jnp.float32),
        grid=(N,),
        in_specs=[pl.BlockSpec((1, R, C), lambda n: (n, 0, 0)),
                  pl.BlockSpec((1, C), lambda n: (0, 0)),
                  pl.BlockSpec((1, C), lambda n: (0, 0))],
        out_specs=pl.BlockSpec((1, R, C), lambda n: (n, 0, 0)),
        compiler_params=pltpu.CompilerParams(
            dimension_semantics=("parallel",), vmem_limit_bytes=VMEM_LIMIT),
    )(x, scale, shift)


def _bn_affine(s, ss, gamma, beta, count):
    """Fold training-mode BN (biased var, eps=1e-5) into per-channel scale/shift."""
    s = jnp.sum(s, axis=0).reshape(-1)
    ss = jnp.sum(ss, axis=0).reshape(-1)
    mean = s / count
    # NOTE: single-pass E[x^2]-E[x]^2 in f32; clamped at 0 to guard the rsqrt.
    var = jnp.maximum(ss / count - mean * mean, 0.0)
    scale = gamma * jax.lax.rsqrt(var + EPS)
    shift = beta - mean * scale
    return scale.reshape(1, -1), shift.reshape(1, -1)


# ---------------------------------------------------------------------------
# public wrapper (NCHW in / NCHW out, like the PyTorch module)
# ---------------------------------------------------------------------------
def expanding_stage_forward(x_nchw, xcat_nchw, params):
    N, Cin, H, W = x_nchw.shape
    _, Ccat, HP, WP = xcat_nchw.shape
    assert HP == 2 * H and WP == 2 * W
    Cup = params["w_up"].shape[-1]

    x_nhwc = jnp.transpose(x_nchw, (0, 2, 3, 1))                            # (N,H,W,Cin)
    xcat_flat = jnp.transpose(xcat_nchw, (0, 2, 3, 1)).reshape(N, HP * WP, Ccat)

    wm = params["w_up"].reshape(4 * Cin, Cup).astype(jnp.bfloat16)
    b_up = params["b_up"].reshape(1, Cup).astype(jnp.float32)

    # up-branch: upsample + 2x2 conv + pad   (phase-split layout, reshaped for free)
    up = _up_conv2x2(x_nhwc, wm, b_up, H=H, W=W, Cin=Cin, Cup=Cup)
    up_flat = up.reshape(N, HP * WP, Cup)

    # ConvModule 1: conv3x3 over [x_cat, up] (no materialised concat) + BN stats
    C1 = params["w1"].shape[-1]
    w1 = params["w1"].reshape(9 * (Ccat + Cup), C1).astype(jnp.bfloat16)
    conv1, s1, ss1 = _conv3x3_stats([xcat_flat, up_flat], w1, HP=HP, WP=WP)
    scale1, shift1 = _bn_affine(s1, ss1, params["g1"], params["b1"], N * HP * WP)

    # ConvModule 2: BN1+ReLU1 fused into the conv as a pre-norm, then conv3x3 + BN stats
    C2 = params["w2"].shape[-1]
    w2 = params["w2"].reshape(9 * C1, C2).astype(jnp.bfloat16)
    conv2, s2, ss2 = _conv3x3_stats([conv1], w2, HP=HP, WP=WP,
                                    prenorm=(scale1, shift1))
    scale2, shift2 = _bn_affine(s2, ss2, params["g2"], params["b2"], N * HP * WP)

    y = _bn_relu(conv2, scale2, shift2)                                     # (N,R,C2)
    return jnp.transpose(y.reshape(N, HP, WP, C2), (0, 3, 1, 2))


# ---------------------------------------------------------------------------
# pure-JAX reference (PyTorch semantics, f32 / HIGHEST) for the sanity check
# ---------------------------------------------------------------------------
def _bilinear_matrix(size_in):
    size_out = 2 * size_in
    a = np.zeros((size_out, size_in), np.float64)
    for i in range(size_out):
        src = (i + 0.5) * 0.5 - 0.5
        src = max(src, 0.0)
        x0 = min(int(np.floor(src)), size_in - 1)
        x1 = min(x0 + 1, size_in - 1)
        l1 = src - x0
        a[i, x0] += 1.0 - l1
        a[i, x1] += l1
    return a.astype(np.float32)


def reference_forward(x, x_cat, params, H, W):
    ah = jnp.asarray(_bilinear_matrix(H))
    aw = jnp.asarray(_bilinear_matrix(W))
    up = jnp.einsum('ph,qw,nchw->ncpq', ah, aw, x, precision=HIGHEST)
    N, _, HP, WP = up.shape
    Ho, Wo = HP - 1, WP - 1
    w_up, b_up = params["w_up"], params["b_up"]
    conv = jnp.zeros((N, w_up.shape[-1], Ho, Wo), jnp.float32)
    for i in range(2):
        for j in range(2):
            conv = conv + jnp.einsum('nchw,cd->ndhw', up[:, :, i:i + Ho, j:j + Wo],
                                     w_up[i, j], precision=HIGHEST)
    conv = conv + b_up[None, :, None, None]
    conv = jnp.pad(conv, ((0, 0), (0, 0), (0, 1), (0, 1)))
    y = jnp.concatenate([x_cat, conv], axis=1)

    def conv_module(y, w, g, b):
        Hh, Ww = y.shape[2], y.shape[3]
        yp = jnp.pad(y, ((0, 0), (0, 0), (1, 1), (1, 1)))
        out = jnp.zeros((y.shape[0], w.shape[-1], Hh, Ww), jnp.float32)
        for i in range(3):
            for j in range(3):
                out = out + jnp.einsum('nchw,cd->ndhw', yp[:, :, i:i + Hh, j:j + Ww],
                                       w[i, j], precision=HIGHEST)
        mean = out.mean(axis=(0, 2, 3), keepdims=True)
        var = ((out - mean) ** 2).mean(axis=(0, 2, 3), keepdims=True)
        out = (out - mean) * jax.lax.rsqrt(var + EPS)
        out = out * g[None, :, None, None] + b[None, :, None, None]
        return jnp.maximum(out, 0.0)

    y = conv_module(y, params["w1"], params["g1"], params["b1"])
    y = conv_module(y, params["w2"], params["g2"], params["b2"])
    return y


if __name__ == "__main__":
    in_channels, out_channels = 4, 2
    N, H, W = 2, 8, 8
    HP, WP = 2 * H, 2 * W
    Ccat = in_channels - out_channels   # skip channels so concat width == in_channels

    key = jax.random.PRNGKey(0)
    kx, kc, k0, k1, k2, k3 = jax.random.split(key, 6)
    x = jax.random.normal(kx, (N, in_channels, H, W), jnp.float32)
    x_cat = jax.random.normal(kc, (N, Ccat, HP, WP), jnp.float32)

    params = {
        # nn.Conv2d(in, out, 2) weight in HWIO + bias
        "w_up": jax.random.normal(k0, (2, 2, in_channels, out_channels), jnp.float32) * 0.25,
        "b_up": jax.random.normal(k1, (out_channels,), jnp.float32) * 0.1,
        # ConvModule 1: Conv2d(in, out, 3, bias=False) + BN(out)
        "w1": jax.random.normal(k2, (3, 3, in_channels, out_channels), jnp.float32) * 0.2,
        "g1": jnp.ones((out_channels,), jnp.float32),
        "b1": jnp.zeros((out_channels,), jnp.float32),
        # ConvModule 2: Conv2d(out, out, 3, bias=False) + BN(out)
        "w2": jax.random.normal(k3, (3, 3, out_channels, out_channels), jnp.float32) * 0.2,
        "g2": jnp.ones((out_channels,), jnp.float32),
        "b2": jnp.zeros((out_channels,), jnp.float32),
    }

    out = jax.block_until_ready(expanding_stage_forward(x, x_cat, params))
    ref = jax.block_until_ready(reference_forward(x, x_cat, params, H, W))

    assert out.shape == (N, out_channels, HP, WP), out.shape
    # bf16 MXU inputs (f32 accumulation) -> slightly looser tolerance than pure f32
    if not np.allclose(np.asarray(out), np.asarray(ref), atol=3e-2, rtol=3e-2):
        raise AssertionError("Pallas output does not match JAX reference")
    print("KERNEL_OK")
</pallas_src>

<mosaic_0001>
module attributes {stable_mosaic.version = 11 : i64} {
  func.func @kernel(%arg0: i32, %arg1: memref<1x8x8x4xf32, #tpu.memory_space<vmem>>, %arg2: memref<16x2xbf16, #tpu.memory_space<vmem>>, %arg3: memref<1x2xf32, #tpu.memory_space<vmem>>, %arg4: memref<1x16x8x4xf32, #tpu.memory_space<vmem>>) attributes {dimension_semantics = [#tpu.dimension_semantics<parallel>], iteration_bounds = array<i64: 2>, scalar_prefetch = 0 : i64, scratch_operands = 0 : i64, tpu.core_type = #tpu.core_type<tc>, window_params = [{transform_indices = @transform_0, window_bounds = array<i64: 1, 8, 8, 4>}, {pipeline_mode = #tpu.pipeline_mode<synchronous>, transform_indices = @transform_1, window_bounds = array<i64: 16, 2>}, {pipeline_mode = #tpu.pipeline_mode<synchronous>, transform_indices = @transform_2, window_bounds = array<i64: 1, 2>}, {transform_indices = @transform_3, window_bounds = array<i64: 1, 16, 8, 4>}]} {
    %c0 = arith.constant 0 : index
    %c0_0 = arith.constant 0 : index
    %c0_1 = arith.constant 0 : index
    %c0_2 = arith.constant 0 : index
    %0 = vector.load %arg1[%c0, %c0_0, %c0_1, %c0_2] : memref<1x8x8x4xf32, #tpu.memory_space<vmem>>, vector<1x8x8x4xf32>
    %1 = vector.shape_cast %0 : vector<1x8x8x4xf32> to vector<8x8x4xf32>
    %2 = vector.extract_strided_slice %1 {offsets = [0, 0, 0], sizes = [1, 8, 4], strides = [1, 1, 1]} : vector<8x8x4xf32> to vector<1x8x4xf32>
    %3 = vector.extract_strided_slice %1 {offsets = [0, 0, 0], sizes = [7, 8, 4], strides = [1, 1, 1]} : vector<8x8x4xf32> to vector<7x8x4xf32>
    %4 = tpu.concatenate %2, %3 in 0 : vector<1x8x4xf32>, vector<7x8x4xf32> -> vector<8x8x4xf32>
    %5 = vector.extract_strided_slice %1 {offsets = [1, 0, 0], sizes = [7, 8, 4], strides = [1, 1, 1]} : vector<8x8x4xf32> to vector<7x8x4xf32>
    %6 = vector.extract_strided_slice %1 {offsets = [7, 0, 0], sizes = [1, 8, 4], strides = [1, 1, 1]} : vector<8x8x4xf32> to vector<1x8x4xf32>
    %7 = tpu.concatenate %5, %6 in 0 : vector<7x8x4xf32>, vector<1x8x4xf32> -> vector<8x8x4xf32>
    %cst = arith.constant 7.500000e-01 : f32
    %8 = vector.broadcast %cst : f32 to vector<8x8x4xf32>
    %9 = arith.mulf %8, %1 : vector<8x8x4xf32>
    %cst_3 = arith.constant 2.500000e-01 : f32
    %10 = vector.broadcast %cst_3 : f32 to vector<8x8x4xf32>
    %11 = arith.mulf %10, %4 : vector<8x8x4xf32>
    %12 = arith.addf %9, %11 : vector<8x8x4xf32>
    %cst_4 = arith.constant 7.500000e-01 : f32
    %13 = vector.broadcast %cst_4 : f32 to vector<8x8x4xf32>
    %14 = arith.mulf %13, %1 : vector<8x8x4xf32>
    %cst_5 = arith.constant 2.500000e-01 : f32
    %15 = vector.broadcast %cst_5 : f32 to vector<8x8x4xf32>
    %16 = arith.mulf %15, %7 : vector<8x8x4xf32>
    %17 = arith.addf %14, %16 : vector<8x8x4xf32>
    %18 = vector.shape_cast %12 : vector<8x8x4xf32> to vector<8x1x8x4xf32>
    %19 = vector.shape_cast %17 : vector<8x8x4xf32> to vector<8x1x8x4xf32>
    %20 = tpu.concatenate %18, %19 in 1 : vector<8x1x8x4xf32>, vector<8x1x8x4xf32> -> vector<8x2x8x4xf32>
    %21 = vector.shape_cast %20 : vector<8x2x8x4xf32> to vector<16x8x4xf32>
    %22 = vector.extract_strided_slice %21 {offsets = [0, 0, 0], sizes = [16, 1, 4], strides = [1, 1, 1]} : vector<16x8x4xf32> to vector<16x1x4xf32>
    %23 = vector.extract_strided_slice %21 {offsets = [0, 0, 0], sizes = [16, 7, 4], strides = [1, 1, 1]} : vector<16x8x4xf32> to vector<16x7x4xf32>
    %24 = tpu.concatenate %22, %23 in 1 : vector<16x1x4xf32>, vector<16x7x4xf32> -> vector<16x8x4xf32>
    %25 = vector.extract_strided_slice %21 {offsets = [0, 1, 0], sizes = [16, 7, 4], strides = [1, 1, 1]} : vector<16x8x4xf32> to vector<16x7x4xf32>
    %26 = vector.extract_strided_slice %21 {offsets = [0, 7, 0], sizes = [16, 1, 4], strides = [1, 1, 1]} : vector<16x8x4xf32> to vector<16x1x4xf32>
    %27 = tpu.concatenate %25, %26 in 1 : vector<16x7x4xf32>, vector<16x1x4xf32> -> vector<16x8x4xf32>
    %cst_6 = arith.constant 7.500000e-01 : f32
    %28 = vector.broadcast %cst_6 : f32 to vector<16x8x4xf32>
    %29 = arith.mulf %28, %21 : vector<16x8x4xf32>
    %cst_7 = arith.constant 2.500000e-01 : f32
    %30 = vector.broadcast %cst_7 : f32 to vector<16x8x4xf32>
    %31 = arith.mulf %30, %24 : vector<16x8x4xf32>
    %32 = arith.addf %29, %31 : vector<16x8x4xf32>
    %cst_8 = arith.constant 7.500000e-01 : f32
    %33 = vector.broadcast %cst_8 : f32 to vector<16x8x4xf32>
    %34 = arith.mulf %33, %21 : vector<16x8x4xf32>
    %cst_9 = arith.constant 2.500000e-01 : f32
    %35 = vector.broadcast %cst_9 : f32 to vector<16x8x4xf32>
    %36 = arith.mulf %35, %27 : vector<16x8x4xf32>
    %37 = arith.addf %34, %36 : vector<16x8x4xf32>
    %38 = vector.extract_strided_slice %32 {offsets = [1, 0, 0], sizes = [15, 8, 4], strides = [1, 1, 1]} : vector<16x8x4xf32> to vector<15x8x4xf32>
    %39 = vector.extract_strided_slice %32 {offsets = [15, 0, 0], sizes = [1, 8, 4], strides = [1, 1, 1]} : vector<16x8x4xf32> to vector<1x8x4xf32>
    %40 = tpu.concatenate %38, %39 in 0 : vector<15x8x4xf32>, vector<1x8x4xf32> -> vector<16x8x4xf32>
    %41 = vector.extract_strided_slice %37 {offsets = [1, 0, 0], sizes = [15, 8, 4], strides = [1, 1, 1]} : vector<16x8x4xf32> to vector<15x8x4xf32>
    %42 = vector.extract_strided_slice %37 {offsets = [15, 0, 0], sizes = [1, 8, 4], strides = [1, 1, 1]} : vector<16x8x4xf32> to vector<1x8x4xf32>
    %43 = tpu.concatenate %41, %42 in 0 : vector<15x8x4xf32>, vector<1x8x4xf32> -> vector<16x8x4xf32>
    %44 = vector.extract_strided_slice %32 {offsets = [0, 1, 0], sizes = [16, 7, 4], strides = [1, 1, 1]} : vector<16x8x4xf32> to vector<16x7x4xf32>
    %45 = vector.extract_strided_slice %32 {offsets = [0, 7, 0], sizes = [16, 1, 4], strides = [1, 1, 1]} : vector<16x8x4xf32> to vector<16x1x4xf32>
    %46 = tpu.concatenate %44, %45 in 1 : vector<16x7x4xf32>, vector<16x1x4xf32> -> vector<16x8x4xf32>
    %47 = vector.extract_strided_slice %40 {offsets = [0, 1, 0], sizes = [16, 7, 4], strides = [1, 1, 1]} : vector<16x8x4xf32> to vector<16x7x4xf32>
    %48 = vector.extract_strided_slice %40 {offsets = [0, 7, 0], sizes = [16, 1, 4], strides = [1, 1, 1]} : vector<16x8x4xf32> to vector<16x1x4xf32>
    %49 = tpu.concatenate %47, %48 in 1 : vector<16x7x4xf32>, vector<16x1x4xf32> -> vector<16x8x4xf32>
    %c0_10 = arith.constant 0 : index
    %c0_11 = arith.constant 0 : index
    %50 = vector.load %arg2[%c0_10, %c0_11] : memref<16x2xbf16, #tpu.memory_space<vmem>>, vector<16x2xbf16>
    %51 = tpu.concatenate %32, %37, %40, %43 in 2 : vector<16x8x4xf32>, vector<16x8x4xf32>, vector<16x8x4xf32>, vector<16x8x4xf32> -> vector<16x8x16xf32>
    %52 = arith.truncf %51 : vector<16x8x16xf32> to vector<16x8x16xbf16>
    %53 = tpu.concatenate %37, %46, %43, %49 in 2 : vector<16x8x4xf32>, vector<16x8x4xf32>, vector<16x8x4xf32>, vector<16x8x4xf32> -> vector<16x8x16xf32>
    %54 = arith.truncf %53 : vector<16x8x16xf32> to vector<16x8x16xbf16>
    %55 = vector.shape_cast %52 : vector<16x8x16xbf16> to vector<128x16xbf16>
    %cst_12 = arith.constant dense<0.000000e+00> : vector<128x2xf32>
    %56 = tpu.matmul %55, %50, %cst_12 {dimension_numbers = #tpu.dot_dimension_numbers<[1], [0], [0], [1], [0, 0, 1, 1], [], []>} : vector<128x16xbf16>, vector<16x2xbf16>, vector<128x2xf32> -> vector<128x2xf32>
    %57 = vector.shape_cast %56 : vector<128x2xf32> to vector<16x8x2xf32>
    %58 = vector.shape_cast %54 : vector<16x8x16xbf16> to vector<128x16xbf16>
    %cst_13 = arith.constant dense<0.000000e+00> : vector<128x2xf32>
    %59 = tpu.matmul %58, %50, %cst_13 {dimension_numbers = #tpu.dot_dimension_numbers<[1], [0], [0], [1], [0, 0, 1, 1], [], []>} : vector<128x16xbf16>, vector<16x2xbf16>, vector<128x2xf32> -> vector<128x2xf32>
    %60 = vector.shape_cast %59 : vector<128x2xf32> to vector<16x8x2xf32>
    %c0_14 = arith.constant 0 : index
    %c0_15 = arith.constant 0 : index
    %61 = vector.load %arg3[%c0_14, %c0_15] : memref<1x2xf32, #tpu.memory_space<vmem>>, vector<1x2xf32>
    %62 = vector.shape_cast %61 : vector<1x2xf32> to vector<1x1x2xf32>
    %63 = vector.broadcast %62 : vector<1x1x2xf32> to vector<16x8x2xf32>
    %64 = arith.addf %57, %63 : vector<16x8x2xf32>
    %c0_16 = arith.constant 0 : index
    %c0_17 = arith.constant 0 : index
    %65 = vector.load %arg3[%c0_16, %c0_17] : memref<1x2xf32, #tpu.memory_space<vmem>>, vector<1x2xf32>
    %66 = vector.shape_cast %65 : vector<1x2xf32> to vector<1x1x2xf32>
    %67 = vector.broadcast %66 : vector<1x1x2xf32> to vector<16x8x2xf32>
    %68 = arith.addf %60, %67 : vector<16x8x2xf32>
    %69 = tpu.iota {dimensions = array<i32: 0>} : vector<16x8x1xi32>
    %70 = tpu.iota {dimensions = array<i32: 1>} : vector<16x8x1xi32>
    %c15_i32 = arith.constant 15 : i32
    %71 = vector.broadcast %c15_i32 : i32 to vector<16x8x1xi32>
    %72 = arith.cmpi slt, %69, %71 : vector<16x8x1xi32>
    %cst_18 = arith.constant 0.000000e+00 : f32
    %73 = vector.shape_cast %72 : vector<16x8x1xi1> to vector<16x8x1xi1>
    %74 = vector.broadcast %73 : vector<16x8x1xi1> to vector<16x8x2xi1>
    %75 = vector.broadcast %cst_18 : f32 to vector<16x8x2xf32>
    %76 = arith.select %74, %64, %75 : vector<16x8x2xi1>, vector<16x8x2xf32>
    %c15_i32_19 = arith.constant 15 : i32
    %77 = vector.broadcast %c15_i32_19 : i32 to vector<16x8x1xi32>
    %78 = arith.cmpi slt, %69, %77 : vector<16x8x1xi32>
    %c7_i32 = arith.constant 7 : i32
    %79 = vector.broadcast %c7_i32 : i32 to vector<16x8x1xi32>
    %80 = arith.cmpi slt, %70, %79 : vector<16x8x1xi32>
    %81 = arith.andi %78, %80 : vector<16x8x1xi1>
    %cst_20 = arith.constant 0.000000e+00 : f32
    %82 = vector.shape_cast %81 : vector<16x8x1xi1> to vector<16x8x1xi1>
    %83 = vector.broadcast %82 : vector<16x8x1xi1> to vector<16x8x2xi1>
    %84 = vector.broadcast %cst_20 : f32 to vector<16x8x2xf32>
    %85 = arith.select %83, %68, %84 : vector<16x8x2xi1>, vector<16x8x2xf32>
    %86 = tpu.concatenate %76, %85 in 2 : vector<16x8x2xf32>, vector<16x8x2xf32> -> vector<16x8x4xf32>
    %c0_21 = arith.constant 0 : index
    %c0_22 = arith.constant 0 : index
    %c0_23 = arith.constant 0 : index
    %c0_24 = arith.constant 0 : index
    %87 = vector.load %arg4[%c0_21, %c0_22, %c0_23, %c0_24] : memref<1x16x8x4xf32, #tpu.memory_space<vmem>>, vector<1x16x8x4xf32>
    %88 = vector.shape_cast %87 : vector<1x16x8x4xf32> to vector<16x8x4xf32>
    %89 = vector.shape_cast %86 : vector<16x8x4xf32> to vector<1x16x8x4xf32>
    tpu.vector_store %arg4[%c0_21, %c0_22, %c0_23, %c0_24], %89 {strides = array<i32>} : memref<1x16x8x4xf32, #tpu.memory_space<vmem>>, vector<1x16x8x4xf32>,
    return
  }
  func.func @transform_0(%arg0: i32) -> (i32, i32, i32, i32) {
    %c0_i32 = arith.constant 0 : i32
    %c0_i32_0 = arith.constant 0 : i32
    %c0_i32_1 = arith.constant 0 : i32
    %c0_i32_2 = arith.constant 0 : i32
    return %arg0, %c0_i32, %c0_i32_0, %c0_i32_1 : i32, i32, i32, i32
  }
  func.func @transform_1(%arg0: i32) -> (i32, i32) {
    %c0_i32 = arith.constant 0 : i32
    %c0_i32_0 = arith.constant 0 : i32
    %c0_i32_1 = arith.constant 0 : i32
    return %c0_i32, %c0_i32_0 : i32, i32
  }
  func.func @transform_2(%arg0: i32) -> (i32, i32) {
    %c0_i32 = arith.constant 0 : i32
    %c0_i32_0 = arith.constant 0 : i32
    %c0_i32_1 = arith.constant 0 : i32
    return %c0_i32, %c0_i32_0 : i32, i32
  }
  func.func @transform_3(%arg0: i32) -> (i32, i32, i32, i32) {
    %c0_i32 = arith.constant 0 : i32
    %c0_i32_0 = arith.constant 0 : i32
    %c0_i32_1 = arith.constant 0 : i32
    %c0_i32_2 = arith.constant 0 : i32
    return %arg0, %c0_i32, %c0_i32_0, %c0_i32_1 : i32, i32, i32, i32
  }
}

</mosaic_0001>

<llo_original>
// kernel: tpu_custom_call.1
$region0: #{tpu_custom_call.1}
  #allocation0 [shape = 'u32[]', space=smem, size = 0x4, offset = 0x4, fixed_abs, tag = 'smem constant byte address 0x4 - core index']
  #allocation1 [shape = 'u32[144,128]{1,0:T(1,128)}', space=vmem, size = 0x12000, scoped, tag = 'internal scratch']
  %s0 = inlined_call_operand.vmem [shape: f32[2,8,8,4], index: 0, kind: input, shape index: {}]
  %s1 = inlined_call_operand.vmem [shape: bf16[16,2], index: 1, kind: input, shape index: {}]
  %s2 = inlined_call_operand.vmem [shape: f32[1,2], index: 2, kind: input, shape index: {}]
  %s3 = inlined_call_operand.vmem [shape: f32[2,16,8,4], index: 3, kind: output, shape index: {}]
  %s4 = sld [smem:[#allocation0]]
  $region45: #{tpu_custom_call.1} parent=0
    _
  %s6 = ssub.s32 1, %s4
  %s7 = scalar_select 0, %s6, %s4
  loop: start=0, step=1, limit=4
  $region2: #{tpu_custom_call.1} parent=0 // loop_pre_header
    _
  $region3: #{tpu_custom_call.1} parent=0 // loop_header
    %s9 = sphi 0, %s13
    %p10 = scmp.ge.s32.totalorder %s9, 4
    %s19 = sphi 0, %s21
    %s22 = sphi 0, %s19
    %s23 = sphi 0, %s22
    %s39 = sphi 0, %s23
    %s43 = sphi 0, %s43
    %s45 = sphi 0, %s43
    %s46 = sphi 0, %s45
    %s60 = sphi 0, %s46
    %s64 = sphi 0, %s64
    %s66 = sphi 0, %s64
    %s67 = sphi 0, %s66
    %s81 = sphi 0, %s67
    %s87 = sphi 0, %s89
    %s90 = sphi 0, %s87
    %s91 = sphi 0, %s90
    %s107 = sphi 0, %s91
  $region4: #{tpu_custom_call.1} parent=0 // loop_header_branch
    %12 = sbr.rel (%p10) target = $region8
  $region5: #{tpu_custom_call.1} parent=0 // loop_body
    %s14 = ssub.s32 %s9, 1
    %s15 = ssub.s32 %s9, 2
    %s16 = sadd.s32 %s9, 1
    %s17 = ssub.s32 %s9, %s16
    %p18 = scmp.eq.s32.totalorder %s17, 0
    %s20 = sadd.s32 %s19, 1
    %s21 = scalar_select %p18, %s19, %s20
    %p24 = pneg %p18
    %p25 = scmp.eq.s32.totalorder %s9, 1
    %p26 = por %p24, %p25
    %p27 = scmp.ne.s32.totalorder %s19, %s22
    %p28 = scmp.eq.s32.totalorder %s9, 0
    %p29 = por %p27, %p28
    %p30 = scmp.ne.s32.totalorder %s19, %s22
    %p31 = scmp.eq.s32.totalorder %s14, 1
    %p32 = por %p30, %p31
    %p33 = scmp.ne.s32.totalorder %s22, %s23
    %p34 = scmp.eq.s32.totalorder %s14, 0
    %p35 = por %p33, %p34
    %p36 = scmp.ne.s32.totalorder %s22, %s23
    %p37 = scmp.eq.s32.totalorder %s15, 1
    %p38 = por %p36, %p37
    %p40 = scmp.ne.s32.totalorder %s23, %s39
    %p41 = scmp.eq.s32.totalorder %s15, 0
    %p42 = por %p40, %p41
    %s44 = sadd.s32 %s43, 1
    %p47 = scmp.eq.s32.totalorder %s9, 1
    %p48 = scmp.ne.s32.totalorder %s43, %s45
    %p49 = scmp.eq.s32.totalorder %s9, 0
    %p50 = por %p48, %p49
    %p51 = scmp.ne.s32.totalorder %s43, %s45
    %p52 = scmp.eq.s32.totalorder %s14, 1
    %p53 = por %p51, %p52
    %p54 = scmp.ne.s32.totalorder %s45, %s46
    %p55 = scmp.eq.s32.totalorder %s14, 0
    %p56 = por %p54, %p55
    %p57 = scmp.ne.s32.totalorder %s45, %s46
    %p58 = scmp.eq.s32.totalorder %s15, 1
    %p59 = por %p57, %p58
    %p61 = scmp.ne.s32.totalorder %s46, %s60
    %p62 = scmp.eq.s32.totalorder %s15, 0
    %p63 = por %p61, %p62
    %s65 = sadd.s32 %s64, 1
    %p68 = scmp.eq.s32.totalorder %s9, 1
    %p69 = scmp.ne.s32.totalorder %s64, %s66
    %p70 = scmp.eq.s32.totalorder %s9, 0
    %p71 = por %p69, %p70
    %p72 = scmp.ne.s32.totalorder %s64, %s66
    %p73 = scmp.eq.s32.totalorder %s14, 1
    %p74 = por %p72, %p73
    %p75 = scmp.ne.s32.totalorder %s66, %s67
    %p76 = scmp.eq.s32.totalorder %s14, 0
    %p77 = por %p75, %p76
    %p78 = scmp.ne.s32.totalorder %s66, %s67
    %p79 = scmp.eq.s32.totalorder %s15, 1
    %p80 = por %p78, %p79
    %p82 = scmp.ne.s32.totalorder %s67, %s81
    %p83 = scmp.eq.s32.totalorder %s15, 0
    %p84 = por %p82, %p83
    %s85 = ssub.s32 %s9, %s16
    %p86 = scmp.eq.s32.totalorder %s85, 0
    %s88 = sadd.s32 %s87, 1
    %s89 = scalar_select %p86, %s87, %s88
    %p92 = pneg %p86
    %p93 = scmp.eq.s32.totalorder %s9, 1
    %p94 = por %p92, %p93
    %p95 = scmp.ne.s32.totalorder %s87, %s90
    %p96 = scmp.eq.s32.totalorder %s9, 0
    %p97 = por %p95, %p96
    %p98 = scmp.ne.s32.totalorder %s87, %s90
    %p99 = scmp.eq.s32.totalorder %s14, 1
    %p100 = por %p98, %p99
    %p101 = scmp.ne.s32.totalorder %s90, %s91
    %p102 = scmp.eq.s32.totalorder %s14, 0
    %p103 = por %p101, %p102
    %p104 = scmp.ne.s32.totalorder %s90, %s91
    %p105 = scmp.eq.s32.totalorder %s15, 1
    %p106 = por %p104, %p105
    %p108 = scmp.ne.s32.totalorder %s91, %s107
    %p109 = scmp.eq.s32.totalorder %s15, 0
    %p110 = por %p108, %p109
    %p111 = scmp.le.s32.totalorder 1, %s9
    %p112 = scmp.lt.s32.totalorder %s9, 3
    %p113 = pnand %p111, %p112
    %p114 = pneg %p113
    // Predicated region
    $region9: #{tpu_custom_call.1} parent=5 // pred_check
      _
    $region10: #{tpu_custom_call.1} parent=5 // pred_check_branch
      %116 = sbr.rel (%p113) target = $region12
    $region11: #{tpu_custom_call.1} parent=5 // pred_region
      %s117 = ssub.s32 %s9, 1
      // Predicated region
      $region13: #{tpu_custom_call.1} parent=11 // pred_check
        %p118 = pneg %p56
      $region14: #{tpu_custom_call.1} parent=11 // pred_check_branch
        %120 = sbr.rel (%p118) target = $region16
      $region15: #{tpu_custom_call.1} parent=11 // pred_region
        _
      $region16: #{tpu_custom_call.1} parent=11 // pred_fallthru
        _
      // Predicated region
      $region17: #{tpu_custom_call.1} parent=11 // pred_check
        %p121 = pneg %p77
      $region18: #{tpu_custom_call.1} parent=11 // pred_check_branch
        %123 = sbr.rel (%p121) target = $region20
      $region19: #{tpu_custom_call.1} parent=11 // pred_region
        _
      $region20: #{tpu_custom_call.1} parent=11 // pred_fallthru
        _
    $region12: #{tpu_custom_call.1} parent=5 // pred_fallthru
      _
    %p124 = scmp.lt.s32.totalorder %s9, 2
    // Predicated region
    $region21: #{tpu_custom_call.1} parent=5 // pred_check
      %p125 = pneg %p124
    $region22: #{tpu_custom_call.1} parent=5 // pred_check_branch
      %127 = sbr.rel (%p125) target = $region24
    $region23: #{tpu_custom_call.1} parent=5 // pred_region
      // Predicated region
      $region25: #{tpu_custom_call.1} parent=23 // pred_check
        %p128 = pneg %p29
      $region26: #{tpu_custom_call.1} parent=23 // pred_check_branch
        %130 = sbr.rel (%p128) target = $region28
      $region27: #{tpu_custom_call.1} parent=23 // pred_region
        %p131 = scmp.lt.s32.totalorder %s9, 1
        %s132 = scalar_select %p131, %s9, 1
        %s133 = smul.addr %s132, 8
        %s134 = smul.addr %s133, 8
        %s135 = scalar_lea.vmem %s0, %s134
      $region28: #{tpu_custom_call.1} parent=23 // pred_fallthru
        _
    $region24: #{tpu_custom_call.1} parent=5 // pred_fallthru
      _
    %p136 = scmp.le.s32.totalorder 1, %s9
    %p137 = scmp.lt.s32.totalorder %s9, 3
    %p138 = pnand %p136, %p137
    %p139 = pneg %p138
    // Predicated region
    $region29: #{tpu_custom_call.1} parent=5 // pred_check
      _
    $region30: #{tpu_custom_call.1} parent=5 // pred_check_branch
      %141 = sbr.rel (%p138) target = $region32
    $region31: #{tpu_custom_call.1} parent=5 // pred_region
      %s142 = ssub.s32 %s9, 1
      %p143 = scmp.lt.s32.totalorder %s14, 1
      %s144 = scalar_select %p143, %s14, 1
      %s145 = smul.addr %s144, 8
      %s146 = smul.addr %s145, 8
      %s147 = scalar_lea.vmem %s0, %s146
      %p148 = pneg %p35
      %p149 = pneg %p32
      %p150 = pneg %p56
      %p151 = pneg %p53
      %p152 = pneg %p77
      %p153 = pneg %p74
      %p154 = pneg %p103
      %p155 = pneg %p100
      %p156 = scmp.lt.s32.totalorder %s14, 1
      %s157 = scalar_select %p156, %s14, 1
      %s158 = smul.addr %s157, 16
      %s159 = smul.addr %s158, 8
      %s160 = scalar_lea.vmem %s3, %s159
      %p161 = scmp.lt.s32.totalorder %s14, 1
      %s162 = scalar_select %p161, %s14, 1
      %s163 = smul.addr %s162, 8
      %s164 = smul.addr %s163, 8
      %s165 = scalar_lea.vmem %s0, %s164
      %p166 = scmp.lt.s32.totalorder %s14, 1
      %s167 = scalar_select %p166, %s14, 1
      %s168 = smul.addr %s167, 16
      %s169 = smul.addr %s168, 8
      %s170 = scalar_lea.vmem %s3, %s169
      %v172 = vld [vmem:[%s165] sm:$0xff]
      %v173 = vld [vmem:[%s165 + $0x8] sm:$0xff]
      %v174 = vld [vmem:[%s165 + $0x10] sm:$0xff]
      %v175 = vld [vmem:[%s165 + $0x18] sm:$0xff]
      %v176 = vld [vmem:[%s165 + $0x20] sm:$0xff]
      %v177 = vld [vmem:[%s165 + $0x28] sm:$0xff]
      %v178 = vld [vmem:[%s165 + $0x30] sm:$0xff]
      %v179 = vld [vmem:[%s165 + $0x38] sm:$0xff]
      %v180 = vmul.f32 %v172, 0.75
      %v181 = vmul.f32 %v173, 0.75
      %v182 = vmul.f32 %v174, 0.75
      %v183 = vmul.f32 %v175, 0.75
      %v184 = vmul.f32 %v176, 0.75
      %v185 = vmul.f32 %v177, 0.75
      %v186 = vmul.f32 %v178, 0.75
      %v187 = vmul.f32 %v179, 0.75
      %v188 = vmul.f32 %v172, 0.25
      %v189 = vmul.f32 %v173, 0.25
      %v190 = vmul.f32 %v174, 0.25
      %v191 = vmul.f32 %v175, 0.25
      %v192 = vmul.f32 %v176, 0.25
      %v193 = vmul.f32 %v177, 0.25
      %v194 = vmul.f32 %v178, 0.25
      %v195 = vadd.f32 %v180, %v188
      %v196 = vadd.f32 %v181, %v188
      %v197 = vadd.f32 %v182, %v189
      %v198 = vadd.f32 %v183, %v190
      %v199 = vadd.f32 %v184, %v191
      %v200 = vadd.f32 %v185, %v192
      %v201 = vadd.f32 %v186, %v193
      %v202 = vadd.f32 %v187, %v194
      %v203 = vmul.f32 %v179, 0.25
      %v204 = vadd.f32 %v180, %v189
      %v205 = vadd.f32 %v181, %v190
      %v206 = vadd.f32 %v182, %v191
      %v207 = vadd.f32 %v183, %v192
      %v208 = vadd.f32 %v184, %v193
      %v209 = vadd.f32 %v185, %v194
      %v210 = vadd.f32 %v186, %v203
      %v211 = vadd.f32 %v187, %v203
      %v228 = vrot.slane %v195, 7
      %v229 = vrot.slane %v204, 7
      %v230 = vrot.slane %v196, 7
      %v231 = vrot.slane %v205, 7
      %v232 = vrot.slane %v197, 7
      %v233 = vrot.slane %v206, 7
      %v234 = vrot.slane %v198, 7
      %v235 = vrot.slane %v207, 7
      %v236 = vrot.slane %v199, 7
      %v237 = vrot.slane %v208, 7
      %v238 = vrot.slane %v200, 7
      %v239 = vrot.slane %v209, 7
      %v240 = vrot.slane %v201, 7
      %v241 = vrot.slane %v210, 7
      %v242 = vrot.slane %v202, 7
      %v243 = vrot.slane %v211, 7
      %vm260 = vcmask 1040384
      %v261 = vsel %vm260, %v195, %v228
      %v262 = vsel %vm260, %v204, %v229
      %v263 = vsel %vm260, %v196, %v230
      %v264 = vsel %vm260, %v205, %v231
      %v265 = vsel %vm260, %v197, %v232
      %v266 = vsel %vm260, %v206, %v233
      %v267 = vsel %vm260, %v198, %v234
      %v268 = vsel %vm260, %v207, %v235
      %v269 = vsel %vm260, %v199, %v236
      %v270 = vsel %vm260, %v208, %v237
      %v271 = vsel %vm260, %v200, %v238
      %v272 = vsel %vm260, %v209, %v239
      %v273 = vsel %vm260, %v201, %v240
      %v274 = vsel %vm260, %v210, %v241
      %v275 = vsel %vm260, %v202, %v242
      %v276 = vsel %vm260, %v211, %v243
      %v277 = vrot.slane %v195, 1
      %v278 = vrot.slane %v204, 1
      %v279 = vrot.slane %v196, 1
      %v280 = vrot.slane %v205, 1
      %v281 = vrot.slane %v197, 1
      %v282 = vrot.slane %v206, 1
      %v283 = vrot.slane %v198, 1
      %v284 = vrot.slane %v207, 1
      %v285 = vrot.slane %v199, 1
      %v286 = vrot.slane %v208, 1
      %v287 = vrot.slane %v200, 1
      %v288 = vrot.slane %v209, 1
      %v289 = vrot.slane %v201, 1
      %v290 = vrot.slane %v210, 1
      %v291 = vrot.slane %v202, 1
      %v292 = vrot.slane %v211, 1
      %vm309 = vcmask 1046528
      %v310 = vsel %vm309, %v277, %v195
      %v311 = vsel %vm309, %v278, %v204
      %v312 = vsel %vm309, %v279, %v196
      %v313 = vsel %vm309, %v280, %v205
      %v314 = vsel %vm309, %v281, %v197
      %v315 = vsel %vm309, %v282, %v206
      %v316 = vsel %vm309, %v283, %v198
      %v317 = vsel %vm309, %v284, %v207
      %v318 = vsel %vm309, %v285, %v199
      %v319 = vsel %vm309, %v286, %v208
      %v320 = vsel %vm309, %v287, %v200
      %v321 = vsel %vm309, %v288, %v209
      %v322 = vsel %vm309, %v289, %v201
      %v323 = vsel %vm309, %v290, %v210
      %v324 = vsel %vm309, %v291, %v202
      %v325 = vsel %vm309, %v292, %v211
      %v326 = vmul.f32 %v195, 0.75
      %v327 = vmul.f32 %v204, 0.75
      %v328 = vmul.f32 %v196, 0.75
      %v329 = vmul.f32 %v205, 0.75
      %v330 = vmul.f32 %v197, 0.75
      %v331 = vmul.f32 %v206, 0.75
      %v332 = vmul.f32 %v198, 0.75
      %v333 = vmul.f32 %v207, 0.75
      %v334 = vmul.f32 %v199, 0.75
      %v335 = vmul.f32 %v208, 0.75
      %v336 = vmul.f32 %v200, 0.75
      %v337 = vmul.f32 %v209, 0.75
      %v338 = vmul.f32 %v201, 0.75
      %v339 = vmul.f32 %v210, 0.75
      %v340 = vmul.f32 %v202, 0.75
      %v341 = vmul.f32 %v211, 0.75
      %v342 = vmul.f32 %v261, 0.25
      %v343 = vmul.f32 %v262, 0.25
      %v344 = vmul.f32 %v263, 0.25
      %v345 = vmul.f32 %v264, 0.25
      %v346 = vmul.f32 %v265, 0.25
      %v347 = vmul.f32 %v266, 0.25
      %v348 = vmul.f32 %v267, 0.25
      %v349 = vmul.f32 %v268, 0.25
      %v350 = vmul.f32 %v269, 0.25
      %v351 = vmul.f32 %v270, 0.25
      %v352 = vmul.f32 %v271, 0.25
      %v353 = vmul.f32 %v272, 0.25
      %v354 = vmul.f32 %v273, 0.25
      %v355 = vmul.f32 %v274, 0.25
      %v356 = vmul.f32 %v275, 0.25
      %v357 = vmul.f32 %v276, 0.25
      %v358 = vadd.f32 %v326, %v342
      %v359 = vadd.f32 %v327, %v343
      %v360 = vadd.f32 %v328, %v344
      %v361 = vadd.f32 %v329, %v345
      %v362 = vadd.f32 %v330, %v346
      %v363 = vadd.f32 %v331, %v347
      %v364 = vadd.f32 %v332, %v348
      %v365 = vadd.f32 %v333, %v349
      %v366 = vadd.f32 %v334, %v350
      %v367 = vadd.f32 %v335, %v351
      %v368 = vadd.f32 %v336, %v352
      %v369 = vadd.f32 %v337, %v353
      %v370 = vadd.f32 %v338, %v354
      %v371 = vadd.f32 %v339, %v355
      %v372 = vadd.f32 %v340, %v356
      %v373 = vadd.f32 %v341, %v357
      %v374 = vmul.f32 %v310, 0.25
      %v375 = vmul.f32 %v311, 0.25
      %v376 = vmul.f32 %v312, 0.25
      %v377 = vmul.f32 %v313, 0.25
      %v378 = vmul.f32 %v314, 0.25
      %v379 = vmul.f32 %v315, 0.25
      %v380 = vmul.f32 %v316, 0.25
      %v381 = vmul.f32 %v317, 0.25
      %v382 = vmul.f32 %v318, 0.25
      %v383 = vmul.f32 %v319, 0.25
      %v384 = vmul.f32 %v320, 0.25
      %v385 = vmul.f32 %v321, 0.25
      %v386 = vmul.f32 %v322, 0.25
      %v387 = vmul.f32 %v323, 0.25
      %v388 = vmul.f32 %v324, 0.25
      %v389 = vmul.f32 %v325, 0.25
      %v390 = vadd.f32 %v326, %v374
      %v391 = vadd.f32 %v327, %v375
      %v392 = vadd.f32 %v328, %v376
      %v393 = vadd.f32 %v329, %v377
      %v394 = vadd.f32 %v330, %v378
      %v395 = vadd.f32 %v331, %v379
      %v396 = vadd.f32 %v332, %v380
      %v397 = vadd.f32 %v333, %v381
      %v398 = vadd.f32 %v334, %v382
      %v399 = vadd.f32 %v335, %v383
      %v400 = vadd.f32 %v336, %v384
      %v401 = vadd.f32 %v337, %v385
      %v402 = vadd.f32 %v338, %v386
      %v403 = vadd.f32 %v339, %v387
      %v404 = vadd.f32 %v340, %v388
      %v405 = vadd.f32 %v341, %v389
      %v422 = vrot.slane %v358, 1
      %v423 = vrot.slane %v359, 1
      %v424 = vrot.slane %v360, 1
      %v425 = vrot.slane %v361, 1
      %v426 = vrot.slane %v362, 1
      %v427 = vrot.slane %v363, 1
      %v428 = vrot.slane %v364, 1
      %v429 = vrot.slane %v365, 1
      %v430 = vrot.slane %v366, 1
      %v431 = vrot.slane %v367, 1
      %v432 = vrot.slane %v368, 1
      %v433 = vrot.slane %v369, 1
      %v434 = vrot.slane %v370, 1
      %v435 = vrot.slane %v371, 1
      %v436 = vrot.slane %v372, 1
      %v437 = vrot.slane %v373, 1
      %v454 = vsel %vm309, %v422, %v358
      %v455 = vsel %vm309, %v423, %v359
      %v456 = vsel %vm309, %v424, %v360
      %v457 = vsel %vm309, %v425, %v361
      %v458 = vsel %vm309, %v426, %v362
      %v459 = vsel %vm309, %v427, %v363
      %v460 = vsel %vm309, %v428, %v364
      %v461 = vsel %vm309, %v429, %v365
      %v462 = vsel %vm309, %v430, %v366
      %v463 = vsel %vm309, %v431, %v367
      %v464 = vsel %vm309, %v432, %v368
      %v465 = vsel %vm309, %v433, %v369
      %v466 = vsel %vm309, %v434, %v370
      %v467 = vsel %vm309, %v435, %v371
      %v468 = vsel %vm309, %v436, %v372
      %v469 = vsel %vm309, %v437, %v373
      %v470 = vld [vmem:[%s1] sm:$0xf]
      %v471 = vld [vmem:[%s1 + $0x4] sm:$0xf]
      %488 = vrot.lane.b32.xlu0 %v390, 4
      %v489 = vpop.permute.xlu0 %488
      %490 = vrot.lane.b32.xlu0 %v391, 4
      %v491 = vpop.permute.xlu0 %490
      %492 = vrot.lane.b32.xlu0 %v392, 4
      %v493 = vpop.permute.xlu0 %492
      %494 = vrot.lane.b32.xlu0 %v393, 4
      %v495 = vpop.permute.xlu0 %494
      %496 = vrot.lane.b32.xlu0 %v394, 4
      %v497 = vpop.permute.xlu0 %496
      %498 = vrot.lane.b32.xlu0 %v395, 4
      %v499 = vpop.permute.xlu0 %498
      %500 = vrot.lane.b32.xlu0 %v396, 4
      %v501 = vpop.permute.xlu0 %500
      %502 = vrot.lane.b32.xlu0 %v397, 4
      %v503 = vpop.permute.xlu0 %502
      %504 = vrot.lane.b32.xlu0 %v398, 4
      %v505 = vpop.permute.xlu0 %504
      %506 = vrot.lane.b32.xlu0 %v399, 4
      %v507 = vpop.permute.xlu0 %506
      %508 = vrot.lane.b32.xlu0 %v400, 4
      %v509 = vpop.permute.xlu0 %508
      %510 = vrot.lane.b32.xlu0 %v401, 4
      %v511 = vpop.permute.xlu0 %510
      %512 = vrot.lane.b32.xlu0 %v402, 4
      %v513 = vpop.permute.xlu0 %512
      %514 = vrot.lane.b32.xlu0 %v403, 4
      %v515 = vpop.permute.xlu0 %514
      %516 = vrot.lane.b32.xlu0 %v404, 4
      %v517 = vpop.permute.xlu0 %516
      %518 = vrot.lane.b32.xlu0 %v405, 4
      %v519 = vpop.permute.xlu0 %518
      %536 = vrot.lane.b32.xlu0 %v359, 8
      %v537 = vpop.permute.xlu0 %536
      %538 = vrot.lane.b32.xlu0 %v360, 8
      %v539 = vpop.permute.xlu0 %538
      %540 = vrot.lane.b32.xlu0 %v361, 8
      %v541 = vpop.permute.xlu0 %540
      %542 = vrot.lane.b32.xlu0 %v362, 8
      %v543 = vpop.permute.xlu0 %542
      %544 = vrot.lane.b32.xlu0 %v363, 8
      %v545 = vpop.permute.xlu0 %544
      %546 = vrot.lane.b32.xlu0 %v364, 8
      %v547 = vpop.permute.xlu0 %546
      %548 = vrot.lane.b32.xlu0 %v365, 8
      %v549 = vpop.permute.xlu0 %548
      %550 = vrot.lane.b32.xlu0 %v366, 8
      %v551 = vpop.permute.xlu0 %550
      %552 = vrot.lane.b32.xlu0 %v367, 8
      %v553 = vpop.permute.xlu0 %552
      %554 = vrot.lane.b32.xlu0 %v368, 8
      %v555 = vpop.permute.xlu0 %554
      %556 = vrot.lane.b32.xlu0 %v369, 8
      %v557 = vpop.permute.xlu0 %556
      %558 = vrot.lane.b32.xlu0 %v370, 8
      %v559 = vpop.permute.xlu0 %558
      %560 = vrot.lane.b32.xlu0 %v371, 8
      %v561 = vpop.permute.xlu0 %560
      %562 = vrot.lane.b32.xlu0 %v372, 8
      %v563 = vpop.permute.xlu0 %562
      %564 = vrot.lane.b32.xlu0 %v373, 8
      %v565 = vpop.permute.xlu0 %564
      %581 = vrot.lane.b32.xlu0 %v391, 12
      %v582 = vpop.permute.xlu0 %581
      %583 = vrot.lane.b32.xlu0 %v392, 12
      %v584 = vpop.permute.xlu0 %583
      %585 = vrot.lane.b32.xlu0 %v393, 12
      %v586 = vpop.permute.xlu0 %585
      %587 = vrot.lane.b32.xlu0 %v394, 12
      %v588 = vpop.permute.xlu0 %587
      %589 = vrot.lane.b32.xlu0 %v395, 12
      %v590 = vpop.permute.xlu0 %589
      %591 = vrot.lane.b32.xlu0 %v396, 12
      %v592 = vpop.permute.xlu0 %591
      %593 = vrot.lane.b32.xlu0 %v397, 12
      %v594 = vpop.permute.xlu0 %593
      %595 = vrot.lane.b32.xlu0 %v398, 12
      %v596 = vpop.permute.xlu0 %595
      %597 = vrot.lane.b32.xlu0 %v399, 12
      %v598 = vpop.permute.xlu0 %597
      %599 = vrot.lane.b32.xlu0 %v400, 12
      %v600 = vpop.permute.xlu0 %599
      %601 = vrot.lane.b32.xlu0 %v401, 12
      %v602 = vpop.permute.xlu0 %601
      %603 = vrot.lane.b32.xlu0 %v402, 12
      %v604 = vpop.permute.xlu0 %603
      %605 = vrot.lane.b32.xlu0 %v403, 12
      %v606 = vpop.permute.xlu0 %605
      %607 = vrot.lane.b32.xlu0 %v404, 12
      %v608 = vpop.permute.xlu0 %607
      %609 = vrot.lane.b32.xlu0 %v405, 12
      %v610 = vpop.permute.xlu0 %609
      %vm626 = vcmask 31744
      %v627 = vsel %vm626, %v358, %v489
      %v628 = vsel %vm626, %v359, %v491
      %v629 = vsel %vm626, %v360, %v493
      %v630 = vsel %vm626, %v361, %v495
      %v631 = vsel %vm626, %v362, %v497
      %v632 = vsel %vm626, %v363, %v499
      %v633 = vsel %vm626, %v364, %v501
      %v634 = vsel %vm626, %v365, %v503
      %v635 = vsel %vm626, %v366, %v505
      %v636 = vsel %vm626, %v367, %v507
      %v637 = vsel %vm626, %v368, %v509
      %v638 = vsel %vm626, %v369, %v511
      %v639 = vsel %vm626, %v370, %v513
      %v640 = vsel %vm626, %v371, %v515
      %v641 = vsel %vm626, %v372, %v517
      %v642 = vsel %vm626, %v373, %v519
      %vm643 = vcmask 64512
      %v644 = vsel %vm643, %v627, %v537
      %v645 = vsel %vm643, %v628, %v539
      %v646 = vsel %vm643, %v629, %v541
      %v647 = vsel %vm643, %v630, %v543
      %v648 = vsel %vm643, %v631, %v545
      %v649 = vsel %vm643, %v632, %v547
      %v650 = vsel %vm643, %v633, %v549
      %v651 = vsel %vm643, %v634, %v551
      %v652 = vsel %vm643, %v635, %v553
      %v653 = vsel %vm643, %v636, %v555
      %v654 = vsel %vm643, %v637, %v557
      %v655 = vsel %vm643, %v638, %v559
      %v656 = vsel %vm643, %v639, %v561
      %v657 = vsel %vm643, %v640, %v563
      %v658 = vsel %vm643, %v641, %v565
      %v659 = vsel %vm643, %v642, %v565
      %vm660 = vcmask 97280
      %v661 = vsel %vm660, %v644, %v582
      %v662 = vsel %vm660, %v645, %v584
      %v663 = vsel %vm660, %v646, %v586
      %v664 = vsel %vm660, %v647, %v588
      %v665 = vsel %vm660, %v648, %v590
      %v666 = vsel %vm660, %v649, %v592
      %v667 = vsel %vm660, %v650, %v594
      %v668 = vsel %vm660, %v651, %v596
      %v669 = vsel %vm660, %v652, %v598
      %v670 = vsel %vm660, %v653, %v600
      %v671 = vsel %vm660, %v654, %v602
      %v672 = vsel %vm660, %v655, %v604
      %v673 = vsel %vm660, %v656, %v606
      %v674 = vsel %vm660, %v657, %v608
      %v675 = vsel %vm660, %v658, %v610
      %v676 = vsel %vm660, %v659, %v610
      %v677 = vpack.c.bf16 %v661, %v661
      %v678 = vpack.c.bf16 %v662, %v662
      %v679 = vpack.c.bf16 %v663, %v663
      %v680 = vpack.c.bf16 %v664, %v664
      %v681 = vpack.c.bf16 %v665, %v665
      %v682 = vpack.c.bf16 %v666, %v666
      %v683 = vpack.c.bf16 %v667, %v667
      %v684 = vpack.c.bf16 %v668, %v668
      %v685 = vpack.c.bf16 %v669, %v669
      %v686 = vpack.c.bf16 %v670, %v670
      %v687 = vpack.c.bf16 %v671, %v671
      %v688 = vpack.c.bf16 %v672, %v672
      %v689 = vpack.c.bf16 %v673, %v673
      %v690 = vpack.c.bf16 %v674, %v674
      %v691 = vpack.c.bf16 %v675, %v675
      %v692 = vpack.c.bf16 %v676, %v676
      %709 = vrot.lane.b32.xlu0 %v454, 4
      %v710 = vpop.permute.xlu0 %709
      %711 = vrot.lane.b32.xlu0 %v455, 4
      %v712 = vpop.permute.xlu0 %711
      %713 = vrot.lane.b32.xlu0 %v456, 4
      %v714 = vpop.permute.xlu0 %713
      %715 = vrot.lane.b32.xlu0 %v457, 4
      %v716 = vpop.permute.xlu0 %715
      %717 = vrot.lane.b32.xlu0 %v458, 4
      %v718 = vpop.permute.xlu0 %717
      %719 = vrot.lane.b32.xlu0 %v459, 4
      %v720 = vpop.permute.xlu0 %719
      %721 = vrot.lane.b32.xlu0 %v460, 4
      %v722 = vpop.permute.xlu0 %721
      %723 = vrot.lane.b32.xlu0 %v461, 4
      %v724 = vpop.permute.xlu0 %723
      %725 = vrot.lane.b32.xlu0 %v462, 4
      %v726 = vpop.permute.xlu0 %725
      %727 = vrot.lane.b32.xlu0 %v463, 4
      %v728 = vpop.permute.xlu0 %727
      %729 = vrot.lane.b32.xlu0 %v464, 4
      %v730 = vpop.permute.xlu0 %729
      %731 = vrot.lane.b32.xlu0 %v465, 4
      %v732 = vpop.permute.xlu0 %731
      %733 = vrot.lane.b32.xlu0 %v466, 4
      %v734 = vpop.permute.xlu0 %733
      %735 = vrot.lane.b32.xlu0 %v467, 4
      %v736 = vpop.permute.xlu0 %735
      %737 = vrot.lane.b32.xlu0 %v468, 4
      %v738 = vpop.permute.xlu0 %737
      %739 = vrot.lane.b32.xlu0 %v469, 4
      %v740 = vpop.permute.xlu0 %739
      %757 = vrot.lane.b32.xlu0 %v391, 8
      %v758 = vpop.permute.xlu0 %757
      %759 = vrot.lane.b32.xlu0 %v392, 8
      %v760 = vpop.permute.xlu0 %759
      %761 = vrot.lane.b32.xlu0 %v393, 8
      %v762 = vpop.permute.xlu0 %761
      %763 = vrot.lane.b32.xlu0 %v394, 8
      %v764 = vpop.permute.xlu0 %763
      %765 = vrot.lane.b32.xlu0 %v395, 8
      %v766 = vpop.permute.xlu0 %765
      %767 = vrot.lane.b32.xlu0 %v396, 8
      %v768 = vpop.permute.xlu0 %767
      %769 = vrot.lane.b32.xlu0 %v397, 8
      %v770 = vpop.permute.xlu0 %769
      %771 = vrot.lane.b32.xlu0 %v398, 8
      %v772 = vpop.permute.xlu0 %771
      %773 = vrot.lane.b32.xlu0 %v399, 8
      %v774 = vpop.permute.xlu0 %773
      %775 = vrot.lane.b32.xlu0 %v400, 8
      %v776 = vpop.permute.xlu0 %775
      %777 = vrot.lane.b32.xlu0 %v401, 8
      %v778 = vpop.permute.xlu0 %777
      %779 = vrot.lane.b32.xlu0 %v402, 8
      %v780 = vpop.permute.xlu0 %779
      %781 = vrot.lane.b32.xlu0 %v403, 8
      %v782 = vpop.permute.xlu0 %781
      %783 = vrot.lane.b32.xlu0 %v404, 8
      %v784 = vpop.permute.xlu0 %783
      %785 = vrot.lane.b32.xlu0 %v405, 8
      %v786 = vpop.permute.xlu0 %785
      %802 = vrot.lane.b32.xlu0 %v455, 12
      %v803 = vpop.permute.xlu0 %802
      %804 = vrot.lane.b32.xlu0 %v456, 12
      %v805 = vpop.permute.xlu0 %804
      %806 = vrot.lane.b32.xlu0 %v457, 12
      %v807 = vpop.permute.xlu0 %806
      %808 = vrot.lane.b32.xlu0 %v458, 12
      %v809 = vpop.permute.xlu0 %808
      %810 = vrot.lane.b32.xlu0 %v459, 12
      %v811 = vpop.permute.xlu0 %810
      %812 = vrot.lane.b32.xlu0 %v460, 12
      %v813 = vpop.permute.xlu0 %812
      %814 = vrot.lane.b32.xlu0 %v461, 12
      %v815 = vpop.permute.xlu0 %814
      %816 = vrot.lane.b32.xlu0 %v462, 12
      %v817 = vpop.permute.xlu0 %816
      %818 = vrot.lane.b32.xlu0 %v463, 12
      %v819 = vpop.permute.xlu0 %818
      %820 = vrot.lane.b32.xlu0 %v464, 12
      %v821 = vpop.permute.xlu0 %820
      %822 = vrot.lane.b32.xlu0 %v465, 12
      %v823 = vpop.permute.xlu0 %822
      %824 = vrot.lane.b32.xlu0 %v466, 12
      %v825 = vpop.permute.xlu0 %824
      %826 = vrot.lane.b32.xlu0 %v467, 12
      %v827 = vpop.permute.xlu0 %826
      %828 = vrot.lane.b32.xlu0 %v468, 12
      %v829 = vpop.permute.xlu0 %828
      %830 = vrot.lane.b32.xlu0 %v469, 12
      %v831 = vpop.permute.xlu0 %830
      %v847 = vsel %vm626, %v390, %v710
      %v848 = vsel %vm626, %v391, %v712
      %v849 = vsel %vm626, %v392, %v714
      %v850 = vsel %vm626, %v393, %v716
      %v851 = vsel %vm626, %v394, %v718
      %v852 = vsel %vm626, %v395, %v720
      %v853 = vsel %vm626, %v396, %v722
      %v854 = vsel %vm626, %v397, %v724
      %v855 = vsel %vm626, %v398, %v726
      %v856 = vsel %vm626, %v399, %v728
      %v857 = vsel %vm626, %v400, %v730
      %v858 = vsel %vm626, %v401, %v732
      %v859 = vsel %vm626, %v402, %v734
      %v860 = vsel %vm626, %v403, %v736
      %v861 = vsel %vm626, %v404, %v738
      %v862 = vsel %vm626, %v405, %v740
      %v863 = vsel %vm643, %v847, %v758
      %v864 = vsel %vm643, %v848, %v760
      %v865 = vsel %vm643, %v849, %v762
      %v866 = vsel %vm643, %v850, %v764
      %v867 = vsel %vm643, %v851, %v766
      %v868 = vsel %vm643, %v852, %v768
      %v869 = vsel %vm643, %v853, %v770
      %v870 = vsel %vm643, %v854, %v772
      %v871 = vsel %vm643, %v855, %v774
      %v872 = vsel %vm643, %v856, %v776
      %v873 = vsel %vm643, %v857, %v778
      %v874 = vsel %vm643, %v858, %v780
      %v875 = vsel %vm643, %v859, %v782
      %v876 = vsel %vm643, %v860, %v784
      %v877 = vsel %vm643, %v861, %v786
      %v878 = vsel %vm643, %v862, %v786
      %v879 = vsel %vm660, %v863, %v803
      %v880 = vsel %vm660, %v864, %v805
      %v881 = vsel %vm660, %v865, %v807
      %v882 = vsel %vm660, %v866, %v809
      %v883 = vsel %vm660, %v867, %v811
      %v884 = vsel %vm660, %v868, %v813
      %v885 = vsel %vm660, %v869, %v815
      %v886 = vsel %vm660, %v870, %v817
      %v887 = vsel %vm660, %v871, %v819
      %v888 = vsel %vm660, %v872, %v821
      %v889 = vsel %vm660, %v873, %v823
      %v890 = vsel %vm660, %v874, %v825
      %v891 = vsel %vm660, %v875, %v827
      %v892 = vsel %vm660, %v876, %v829
      %v893 = vsel %vm660, %v877, %v831
      %v894 = vsel %vm660, %v878, %v831
      %v895 = vpack.c.bf16 %v879, %v879
      %v896 = vpack.c.bf16 %v880, %v880
      %v897 = vpack.c.bf16 %v881, %v881
      %v898 = vpack.c.bf16 %v882, %v882
      %v899 = vpack.c.bf16 %v883, %v883
      %v900 = vpack.c.bf16 %v884, %v884
      %v901 = vpack.c.bf16 %v885, %v885
      %v902 = vpack.c.bf16 %v886, %v886
      %v903 = vpack.c.bf16 %v887, %v887
      %v904 = vpack.c.bf16 %v888, %v888
      %v905 = vpack.c.bf16 %v889, %v889
      %v906 = vpack.c.bf16 %v890, %v890
      %v907 = vpack.c.bf16 %v891, %v891
      %v908 = vpack.c.bf16 %v892, %v892
      %v909 = vpack.c.bf16 %v893, %v893
      %v910 = vpack.c.bf16 %v894, %v894
      %v927 = vunpack.c.l.b16 %v677
      %v928 = vunpack.c.l.b16 %v678
      %v929 = vunpack.c.l.b16 %v679
      %v930 = vunpack.c.l.b16 %v680
      %v931 = vunpack.c.l.b16 %v681
      %v932 = vunpack.c.l.b16 %v682
      %v933 = vunpack.c.l.b16 %v683
      %v934 = vunpack.c.l.b16 %v684
      %v935 = vunpack.c.l.b16 %v685
      %v936 = vunpack.c.l.b16 %v686
      %v937 = vunpack.c.l.b16 %v687
      %v938 = vunpack.c.l.b16 %v688
      %v939 = vunpack.c.l.b16 %v689
      %v940 = vunpack.c.l.b16 %v690
      %v941 = vunpack.c.l.b16 %v691
      %v942 = vunpack.c.l.b16 %v692
      %v943 = vpack.c.b16 %v928, %v927
      %v944 = vpack.c.b16 %v930, %v929
      %v945 = vpack.c.b16 %v932, %v931
      %v946 = vpack.c.b16 %v934, %v933
      %v947 = vpack.c.b16 %v936, %v935
      %v948 = vpack.c.b16 %v938, %v937
      %v949 = vpack.c.b16 %v940, %v939
      %v950 = vpack.c.b16 %v942, %v941
      %v953 = vunpack.c.l.b16 %v470
      %v954 = vunpack.c.l.b16 %v471
      %v955 = vpack.c.b16 %v954, %v953
      %vm957 = vcmask 130048
      %v959 = vsel %vm957, %v943, 0
      %v962 = vsel %vm957, %v944, 0
      %v965 = vsel %vm957, %v945, 0
      %v968 = vsel %vm957, %v946, 0
      %v971 = vsel %vm957, %v947, 0
      %v974 = vsel %vm957, %v948, 0
      %v977 = vsel %vm957, %v949, 0
      %v980 = vsel %vm957, %v950, 0
      %982 = vmatprep.subr.bf16.mxu0 0
      %983 = vmatpush1.bf16.msra.mxu0 0
      %984 = vmatprep.subr.bf16.mxu0 0
      %985 = vmatpush1.bf16.msra.mxu0 0
      %986 = vmatprep.subr.bf16.mxu0 0
      %987 = vmatpush1.bf16.msra.mxu0 0
      %988 = vmatprep.subr.bf16.mxu0 0
      %989 = vmatpush1.bf16.msra.mxu0 0
      %990 = vmatprep.subr.bf16.mxu0 0
      %991 = vmatpush1.bf16.msra.mxu0 0
      %992 = vmatprep.subr.bf16.mxu0 0
      %993 = vmatpush1.bf16.msra.mxu0 0
      %994 = vmatprep.subr.bf16.mxu0 0
      %995 = vmatpush1.bf16.msra.mxu0 0
      %996 = vmatprep.subr.bf16.mxu0 0
      %997 = vmatpush1.bf16.msra.mxu0 %v955
      %998 = vmatprep.subr.bf16.mxu0 0
      %999 = vmatpush2.bf16.msra.mxu0 0
      %1000 = vmatprep.subr.bf16.mxu0 0
      %1001 = vmatpush2.bf16.msra.mxu0 0
      %1002 = vmatprep.subr.bf16.mxu0 0
      %1003 = vmatpush2.bf16.msra.mxu0 0
      %1004 = vmatprep.subr.bf16.mxu0 0
      %1005 = vmatpush2.bf16.msra.mxu0 0
      %1006 = vmatprep.subr.bf16.mxu0 0
      %1007 = vmatpush2.bf16.msra.mxu0 0
      %1008 = vmatprep.subr.bf16.mxu0 0
      %1009 = vmatpush2.bf16.msra.mxu0 0
      %1010 = vmatprep.subr.bf16.mxu0 0
      %1011 = vmatpush2.bf16.msra.mxu0 0
      %1012 = vmatprep.subr.bf16.mxu0 0
      %1013 = vmatpush2.bf16.msra.mxu0 0
      %1014 = vmatprep.mubr.bf16.mxu0 0
      %1015 = vmatmul.mubr.bf16.gmra.mxu0 %v959
      %v1016 = vpop.f32.mrf.mxu0
      %v1017 = vadd.f32 0.0, %v1016
      %v1018 = vpop.f32.mrf.mxu0
      %v1019 = vpop.f32.mrf.mxu0
      %v1020 = vadd.f32 0.0, %v1019
      %v1021 = vpop.f32.mrf.mxu0
      %1022 = vmatprep.mubr.bf16.mxu0 0
      %1023 = vmatmul.mubr.bf16.gmra.mxu0 %v962
      %v1024 = vpop.f32.mrf.mxu0
      %v1025 = vadd.f32 0.0, %v1024
      %v1026 = vpop.f32.mrf.mxu0
      %v1027 = vpop.f32.mrf.mxu0
      %v1028 = vadd.f32 0.0, %v1027
      %v1029 = vpop.f32.mrf.mxu0
      %1030 = vmatprep.mubr.bf16.mxu0 0
      %1031 = vmatmul.mubr.bf16.gmra.mxu0 %v965
      %v1032 = vpop.f32.mrf.mxu0
      %v1033 = vadd.f32 0.0, %v1032
      %v1034 = vpop.f32.mrf.mxu0
      %v1035 = vpop.f32.mrf.mxu0
      %v1036 = vadd.f32 0.0, %v1035
      %v1037 = vpop.f32.mrf.mxu0
      %1038 = vmatprep.mubr.bf16.mxu0 0
      %1039 = vmatmul.mubr.bf16.gmra.mxu0 %v968
      %v1040 = vpop.f32.mrf.mxu0
      %v1041 = vadd.f32 0.0, %v1040
      %v1042 = vpop.f32.mrf.mxu0
      %v1043 = vpop.f32.mrf.mxu0
      %v1044 = vadd.f32 0.0, %v1043
      %v1045 = vpop.f32.mrf.mxu0
      %1046 = vmatprep.mubr.bf16.mxu0 0
      %1047 = vmatmul.mubr.bf16.gmra.mxu0 %v971
      %v1048 = vpop.f32.mrf.mxu0
      %v1049 = vadd.f32 0.0, %v1048
      %v1050 = vpop.f32.mrf.mxu0
      %v1051 = vpop.f32.mrf.mxu0
      %v1052 = vadd.f32 0.0, %v1051
      %v1053 = vpop.f32.mrf.mxu0
      %1054 = vmatprep.mubr.bf16.mxu0 0
      %1055 = vmatmul.mubr.bf16.gmra.mxu0 %v974
      %v1056 = vpop.f32.mrf.mxu0
      %v1057 = vadd.f32 0.0, %v1056
      %v1058 = vpop.f32.mrf.mxu0
      %v1059 = vpop.f32.mrf.mxu0
      %v1060 = vadd.f32 0.0, %v1059
      %v1061 = vpop.f32.mrf.mxu0
      %1062 = vmatprep.mubr.bf16.mxu0 0
      %1063 = vmatmul.mubr.bf16.gmra.mxu0 %v977
      %v1064 = vpop.f32.mrf.mxu0
      %v1065 = vadd.f32 0.0, %v1064
      %v1066 = vpop.f32.mrf.mxu0
      %v1067 = vpop.f32.mrf.mxu0
      %v1068 = vadd.f32 0.0, %v1067
      %v1069 = vpop.f32.mrf.mxu0
      %1070 = vmatprep.mubr.bf16.mxu0 0
      %1071 = vmatmul.mubr.bf16.gmra.mxu0 %v980
      %v1072 = vpop.f32.mrf.mxu0
      %v1073 = vadd.f32 0.0, %v1072
      %v1074 = vpop.f32.mrf.mxu0
      %v1075 = vpop.f32.mrf.mxu0
      %v1076 = vadd.f32 0.0, %v1075
      %v1077 = vpop.f32.mrf.mxu0
      %1078 = vdwg.mxu0
      %v1095 = vunpack.c.l.b16 %v895
      %v1096 = vunpack.c.l.b16 %v896
      %v1097 = vunpack.c.l.b16 %v897
      %v1098 = vunpack.c.l.b16 %v898
      %v1099 = vunpack.c.l.b16 %v899
      %v1100 = vunpack.c.l.b16 %v900
      %v1101 = vunpack.c.l.b16 %v901
      %v1102 = vunpack.c.l.b16 %v902
      %v1103 = vunpack.c.l.b16 %v903
      %v1104 = vunpack.c.l.b16 %v904
      %v1105 = vunpack.c.l.b16 %v905
      %v1106 = vunpack.c.l.b16 %v906
      %v1107 = vunpack.c.l.b16 %v907
      %v1108 = vunpack.c.l.b16 %v908
      %v1109 = vunpack.c.l.b16 %v909
      %v1110 = vunpack.c.l.b16 %v910
      %v1111 = vpack.c.b16 %v1096, %v1095
      %v1112 = vpack.c.b16 %v1098, %v1097
      %v1113 = vpack.c.b16 %v1100, %v1099
      %v1114 = vpack.c.b16 %v1102, %v1101
      %v1115 = vpack.c.b16 %v1104, %v1103
      %v1116 = vpack.c.b16 %v1106, %v1105
      %v1117 = vpack.c.b16 %v1108, %v1107
      %v1118 = vpack.c.b16 %v1110, %v1109
      %v1120 = vsel %vm957, %v1111, 0
      %v1123 = vsel %vm957, %v1112, 0
      %v1126 = vsel %vm957, %v1113, 0
      %v1129 = vsel %vm957, %v1114, 0
      %v1132 = vsel %vm957, %v1115, 0
      %v1135 = vsel %vm957, %v1116, 0
      %v1138 = vsel %vm957, %v1117, 0
      %v1141 = vsel %vm957, %v1118, 0
      %1143 = vmatprep.subr.bf16.mxu0 0
      %1144 = vmatpush1.bf16.msra.mxu0 0
      %1145 = vmatprep.subr.bf16.mxu0 0
      %1146 = vmatpush1.bf16.msra.mxu0 0
      %1147 = vmatprep.subr.bf16.mxu0 0
      %1148 = vmatpush1.bf16.msra.mxu0 0
      %1149 = vmatprep.subr.bf16.mxu0 0
      %1150 = vmatpush1.bf16.msra.mxu0 0
      %1151 = vmatprep.subr.bf16.mxu0 0
      %1152 = vmatpush1.bf16.msra.mxu0 0
      %1153 = vmatprep.subr.bf16.mxu0 0
      %1154 = vmatpush1.bf16.msra.mxu0 0
      %1155 = vmatprep.subr.bf16.mxu0 0
      %1156 = vmatpush1.bf16.msra.mxu0 0
      %1157 = vmatprep.subr.bf16.mxu0 0
      %1158 = vmatpush1.bf16.msra.mxu0 %v955
      %1159 = vmatprep.subr.bf16.mxu0 0
      %1160 = vmatpush2.bf16.msra.mxu0 0
      %1161 = vmatprep.subr.bf16.mxu0 0
      %1162 = vmatpush2.bf16.msra.mxu0 0
      %1163 = vmatprep.subr.bf16.mxu0 0
      %1164 = vmatpush2.bf16.msra.mxu0 0
      %1165 = vmatprep.subr.bf16.mxu0 0
      %1166 = vmatpush2.bf16.msra.mxu0 0
      %1167 = vmatprep.subr.bf16.mxu0 0
      %1168 = vmatpush2.bf16.msra.mxu0 0
      %1169 = vmatprep.subr.bf16.mxu0 0
      %1170 = vmatpush2.bf16.msra.mxu0 0
      %1171 = vmatprep.subr.bf16.mxu0 0
      %1172 = vmatpush2.bf16.msra.mxu0 0
      %1173 = vmatprep.subr.bf16.mxu0 0
      %1174 = vmatpush2.bf16.msra.mxu0 0
      %1175 = vmatprep.mubr.bf16.mxu0 0
      %1176 = vmatmul.mubr.bf16.gmra.mxu0 %v1120
      %v1177 = vpop.f32.mrf.mxu0
      %v1178 = vadd.f32 0.0, %v1177
      %v1179 = vpop.f32.mrf.mxu0
      %v1180 = vpop.f32.mrf.mxu0
      %v1181 = vadd.f32 0.0, %v1180
      %v1182 = vpop.f32.mrf.mxu0
      %1183 = vmatprep.mubr.bf16.mxu0 0
      %1184 = vmatmul.mubr.bf16.gmra.mxu0 %v1123
      %v1185 = vpop.f32.mrf.mxu0
      %v1186 = vadd.f32 0.0, %v1185
      %v1187 = vpop.f32.mrf.mxu0
      %v1188 = vpop.f32.mrf.mxu0
      %v1189 = vadd.f32 0.0, %v1188
      %v1190 = vpop.f32.mrf.mxu0
      %1191 = vmatprep.mubr.bf16.mxu0 0
      %1192 = vmatmul.mubr.bf16.gmra.mxu0 %v1126
      %v1193 = vpop.f32.mrf.mxu0
      %v1194 = vadd.f32 0.0, %v1193
      %v1195 = vpop.f32.mrf.mxu0
      %v1196 = vpop.f32.mrf.mxu0
      %v1197 = vadd.f32 0.0, %v1196
      %v1198 = vpop.f32.mrf.mxu0
      %1199 = vmatprep.mubr.bf16.mxu0 0
      %1200 = vmatmul.mubr.bf16.gmra.mxu0 %v1129
      %v1201 = vpop.f32.mrf.mxu0
      %v1202 = vadd.f32 0.0, %v1201
      %v1203 = vpop.f32.mrf.mxu0
      %v1204 = vpop.f32.mrf.mxu0
      %v1205 = vadd.f32 0.0, %v1204
      %v1206 = vpop.f32.mrf.mxu0
      %1207 = vmatprep.mubr.bf16.mxu0 0
      %1208 = vmatmul.mubr.bf16.gmra.mxu0 %v1132
      %v1209 = vpop.f32.mrf.mxu0
      %v1210 = vadd.f32 0.0, %v1209
      %v1211 = vpop.f32.mrf.mxu0
      %v1212 = vpop.f32.mrf.mxu0
      %v1213 = vadd.f32 0.0, %v1212
      %v1214 = vpop.f32.mrf.mxu0
      %1215 = vmatprep.mubr.bf16.mxu0 0
      %1216 = vmatmul.mubr.bf16.gmra.mxu0 %v1135
      %v1217 = vpop.f32.mrf.mxu0
      %v1218 = vadd.f32 0.0, %v1217
      %v1219 = vpop.f32.mrf.mxu0
      %v1220 = vpop.f32.mrf.mxu0
      %v1221 = vadd.f32 0.0, %v1220
      %v1222 = vpop.f32.mrf.mxu0
      %1223 = vmatprep.mubr.bf16.mxu0 0
      %1224 = vmatmul.mubr.bf16.gmra.mxu0 %v1138
      %v1225 = vpop.f32.mrf.mxu0
      %v1226 = vadd.f32 0.0, %v1225
      %v1227 = vpop.f32.mrf.mxu0
      %v1228 = vpop.f32.mrf.mxu0
      %v1229 = vadd.f32 0.0, %v1228
      %v1230 = vpop.f32.mrf.mxu0
      %1231 = vmatprep.mubr.bf16.mxu0 0
      %1232 = vmatmul.mubr.bf16.gmra.mxu0 %v1141
      %v1233 = vpop.f32.mrf.mxu0
      %v1234 = vadd.f32 0.0, %v1233
      %v1235 = vpop.f32.mrf.mxu0
      %v1236 = vpop.f32.mrf.mxu0
      %v1237 = vadd.f32 0.0, %v1236
      %v1238 = vpop.f32.mrf.mxu0
      %1239 = vdwg.mxu0
      %v1240 = vld [vmem:[%s2] sm:$0x1]
      %v1242 = vlaneseq
      %v1243 = vshrl.u32 %v1242, 7
      %v1244 = vsub.s32 0, %v1243
      %v1245 = vrot.slane %v1240, %v1244
      %v1247 = vadd.f32 %v1017, %v1245
      %v1248 = vadd.f32 %v1020, %v1245
      %v1249 = vadd.f32 %v1025, %v1245
      %v1250 = vadd.f32 %v1028, %v1245
      %v1251 = vadd.f32 %v1033, %v1245
      %v1252 = vadd.f32 %v1036, %v1245
      %v1253 = vadd.f32 %v1041, %v1245
      %v1254 = vadd.f32 %v1044, %v1245
      %v1255 = vadd.f32 %v1049, %v1245
      %v1256 = vadd.f32 %v1052, %v1245
      %v1257 = vadd.f32 %v1057, %v1245
      %v1258 = vadd.f32 %v1060, %v1245
      %v1259 = vadd.f32 %v1065, %v1245
      %v1260 = vadd.f32 %v1068, %v1245
      %v1261 = vadd.f32 %v1073, %v1245
      %v1262 = vadd.f32 %v1076, %v1245
      %v1263 = vadd.f32 %v1178, %v1245
      %v1264 = vadd.f32 %v1181, %v1245
      %v1265 = vadd.f32 %v1186, %v1245
      %v1266 = vadd.f32 %v1189, %v1245
      %v1267 = vadd.f32 %v1194, %v1245
      %v1268 = vadd.f32 %v1197, %v1245
      %v1269 = vadd.f32 %v1202, %v1245
      %v1270 = vadd.f32 %v1205, %v1245
      %v1271 = vadd.f32 %v1210, %v1245
      %v1272 = vadd.f32 %v1213, %v1245
      %v1273 = vadd.f32 %v1218, %v1245
      %v1274 = vadd.f32 %v1221, %v1245
      %v1275 = vadd.f32 %v1226, %v1245
      %v1276 = vadd.f32 %v1229, %v1245
      %v1277 = vadd.f32 %v1234, %v1245
      %v1278 = vadd.f32 %v1237, %v1245
      %v1279 = vlaneseq
      %v1280 = vshrl.u32 %v1279, 7
      %v1281 = vsel 1, %v1247, 0.0
      %v1282 = vsel 1, %v1248, 0.0
      %v1283 = vsel 1, %v1249, 0.0
      %v1284 = vsel 1, %v1250, 0.0
      %v1285 = vsel 1, %v1251, 0.0
      %v1286 = vsel 1, %v1252, 0.0
      %v1287 = vsel 1, %v1253, 0.0
      %v1288 = vsel 1, %v1254, 0.0
      %v1289 = vsel 1, %v1255, 0.0
      %v1290 = vsel 1, %v1256, 0.0
      %v1291 = vsel 1, %v1257, 0.0
      %v1292 = vsel 1, %v1258, 0.0
      %v1293 = vsel 1, %v1259, 0.0
      %v1294 = vsel 1, %v1260, 0.0
      %v1295 = vsel 1, %v1261, 0.0
      %v1296 = vsel 0, %v1262, 0.0
      %vm1297 = vcmp.lt.s32.totalorder %v1280, 7
      %vm1298 = vmand 1, %vm1297
      %vm1299 = vmand 0, %vm1297
      %v1300 = vsel %vm1298, 1, 0
      %v1301 = vsel %vm1299, 1, 0
      %vm1302 = vcmp.eq.s32.totalorder %v1300, 1
      %vm1303 = vcmp.eq.s32.totalorder %v1301, 1
      %v1304 = vsel %vm1302, %v1263, 0.0
      %v1305 = vsel %vm1302, %v1264, 0.0
      %v1306 = vsel %vm1302, %v1265, 0.0
      %v1307 = vsel %vm1302, %v1266, 0.0
      %v1308 = vsel %vm1302, %v1267, 0.0
      %v1309 = vsel %vm1302, %v1268, 0.0
      %v1310 = vsel %vm1302, %v1269, 0.0
      %v1311 = vsel %vm1302, %v1270, 0.0
      %v1312 = vsel %vm1302, %v1271, 0.0
      %v1313 = vsel %vm1302, %v1272, 0.0
      %v1314 = vsel %vm1302, %v1273, 0.0
      %v1315 = vsel %vm1302, %v1274, 0.0
      %v1316 = vsel %vm1302, %v1275, 0.0
      %v1317 = vsel %vm1302, %v1276, 0.0
      %v1318 = vsel %vm1302, %v1277, 0.0
      %v1319 = vsel %vm1303, %v1278, 0.0
      %1336 = vrot.lane.b32.xlu0 %v1304, 2
      %v1337 = vpop.permute.xlu0 %1336
      %1338 = vrot.lane.b32.xlu0 %v1305, 2
      %v1339 = vpop.permute.xlu0 %1338
      %1340 = vrot.lane.b32.xlu0 %v1306, 2
      %v1341 = vpop.permute.xlu0 %1340
      %1342 = vrot.lane.b32.xlu0 %v1307, 2
      %v1343 = vpop.permute.xlu0 %1342
      %1344 = vrot.lane.b32.xlu0 %v1308, 2
      %v1345 = vpop.permute.xlu0 %1344
      %1346 = vrot.lane.b32.xlu0 %v1309, 2
      %v1347 = vpop.permute.xlu0 %1346
      %1348 = vrot.lane.b32.xlu0 %v1310, 2
      %v1349 = vpop.permute.xlu0 %1348
      %1350 = vrot.lane.b32.xlu0 %v1311, 2
      %v1351 = vpop.permute.xlu0 %1350
      %1352 = vrot.lane.b32.xlu0 %v1312, 2
      %v1353 = vpop.permute.xlu0 %1352
      %1354 = vrot.lane.b32.xlu0 %v1313, 2
      %v1355 = vpop.permute.xlu0 %1354
      %1356 = vrot.lane.b32.xlu0 %v1314, 2
      %v1357 = vpop.permute.xlu0 %1356
      %1358 = vrot.lane.b32.xlu0 %v1315, 2
      %v1359 = vpop.permute.xlu0 %1358
      %1360 = vrot.lane.b32.xlu0 %v1316, 2
      %v1361 = vpop.permute.xlu0 %1360
      %1362 = vrot.lane.b32.xlu0 %v1317, 2
      %v1363 = vpop.permute.xlu0 %1362
      %1364 = vrot.lane.b32.xlu0 %v1318, 2
      %v1365 = vpop.permute.xlu0 %1364
      %1366 = vrot.lane.b32.xlu0 %v1319, 2
      %v1367 = vpop.permute.xlu0 %1366
      %vm1384 = vcmask 15360
      %v1385 = vsel %vm1384, %v1281, %v1337
      %v1386 = vsel %vm1384, %v1282, %v1339
      %v1387 = vsel %vm1384, %v1283, %v1341
      %v1388 = vsel %vm1384, %v1284, %v1343
      %v1389 = vsel %vm1384, %v1285, %v1345
      %v1390 = vsel %vm1384, %v1286, %v1347
      %v1391 = vsel %vm1384, %v1287, %v1349
      %v1392 = vsel %vm1384, %v1288, %v1351
      %v1393 = vsel %vm1384, %v1289, %v1353
      %v1394 = vsel %vm1384, %v1290, %v1355
      %v1395 = vsel %vm1384, %v1291, %v1357
      %v1396 = vsel %vm1384, %v1292, %v1359
      %v1397 = vsel %vm1384, %v1293, %v1361
      %v1398 = vsel %vm1384, %v1294, %v1363
      %v1399 = vsel %vm1384, %v1295, %v1365
      %v1400 = vsel %vm1384, %v1296, %v1367
      %1401 = vst.msk [vmem:[%s170] sm:$0xff] %vm626, %v1385
      %1402 = vst.msk [vmem:[%s170 + $0x8] sm:$0xff] %vm626, %v1386
      %1403 = vst.msk [vmem:[%s170 + $0x10] sm:$0xff] %vm626, %v1387
      %1404 = vst.msk [vmem:[%s170 + $0x18] sm:$0xff] %vm626, %v1388
      %1405 = vst.msk [vmem:[%s170 + $0x20] sm:$0xff] %vm626, %v1389
      %1406 = vst.msk [vmem:[%s170 + $0x28] sm:$0xff] %vm626, %v1390
      %1407 = vst.msk [vmem:[%s170 + $0x30] sm:$0xff] %vm626, %v1391
      %1408 = vst.msk [vmem:[%s170 + $0x38] sm:$0xff] %vm626, %v1392
      %1409 = vst.msk [vmem:[%s170 + $0x40] sm:$0xff] %vm626, %v1393
      %1410 = vst.msk [vmem:[%s170 + $0x48] sm:$0xff] %vm626, %v1394
      %1411 = vst.msk [vmem:[%s170 + $0x50] sm:$0xff] %vm626, %v1395
      %1412 = vst.msk [vmem:[%s170 + $0x58] sm:$0xff] %vm626, %v1396
      %1413 = vst.msk [vmem:[%s170 + $0x60] sm:$0xff] %vm626, %v1397
      %1414 = vst.msk [vmem:[%s170 + $0x68] sm:$0xff] %vm626, %v1398
      %1415 = vst.msk [vmem:[%s170 + $0x70] sm:$0xff] %vm626, %v1399
      %1416 = vst.msk [vmem:[%s170 + $0x78] sm:$0xff] %vm626, %v1400
      %p1417 = scmp.lt.s32.totalorder %s14, 1
      %s1418 = scalar_select %p1417, %s14, 1
      %s1419 = smul.addr %s1418, 16
      %s1420 = smul.addr %s1419, 8
      %s1421 = scalar_lea.vmem %s3, %s1420
      // Predicated region
      $region33: #{tpu_custom_call.1} parent=31 // pred_check
        %p1422 = pneg %p100
      $region34: #{tpu_custom_call.1} parent=31 // pred_check_branch
        %1424 = sbr.rel (%p1422) target = $region36
      $region35: #{tpu_custom_call.1} parent=31 // pred_region
        _
      $region36: #{tpu_custom_call.1} parent=31 // pred_fallthru
        _
    $region32: #{tpu_custom_call.1} parent=5 // pred_fallthru
      _
    %p1425 = scmp.le.s32.totalorder 2, %s9
    // Predicated region
    $region37: #{tpu_custom_call.1} parent=5 // pred_check
      %p1426 = pneg %p1425
    $region38: #{tpu_custom_call.1} parent=5 // pred_check_branch
      %1428 = sbr.rel (%p1426) target = $region40
    $region39: #{tpu_custom_call.1} parent=5 // pred_region
      %s1429 = ssub.s32 %s9, 2
      // Predicated region
      $region41: #{tpu_custom_call.1} parent=39 // pred_check
        %p1430 = pneg %p106
      $region42: #{tpu_custom_call.1} parent=39 // pred_check_branch
        %1432 = sbr.rel (%p1430) target = $region44
      $region43: #{tpu_custom_call.1} parent=39 // pred_region
        %p1433 = scmp.lt.s32.totalorder %s15, 1
        %s1434 = scalar_select %p1433, %s15, 1
        %s1435 = smul.addr %s1434, 16
        %s1436 = smul.addr %s1435, 8
        %s1437 = scalar_lea.vmem %s3, %s1436
      $region44: #{tpu_custom_call.1} parent=39 // pred_fallthru
        _
    $region40: #{tpu_custom_call.1} parent=5 // pred_fallthru
      _
  $region6: #{tpu_custom_call.1} parent=0 // loop_footer
    %s13 = sadd.s32 1, %s9
  $region7: #{tpu_custom_call.1} parent=0 // loop_footer_branch
    %8 = sbr.rel target = $region3
  $region8: #{tpu_custom_call.1} parent=0 // loop_exit
    _

</llo_original>
